<compile_context>
chip_gen: v7x
topology: tpu7x:2x2x1
jax: 0.10.0
libtpu: 0.0.40
codegen_flags: <defaults>
</compile_context>

<pallas_src>
import jax
import jax.numpy as jnp
from jax.experimental import pallas as pl
from jax.experimental.pallas import tpu as pltpu


# ----------------------------- helpers ----------------------------------------

def _round_up(v, m):
    return (v + m - 1) // m * m


def _pad2d(a, rows, cols):
    return jnp.pad(a, ((0, rows - a.shape[0]), (0, cols - a.shape[1])))


def _vmem_budget_bytes():
    """Generation-aware VMEM budget (~85% of physical per-core VMEM)."""
    cap = 64 << 20                       # safe floor (v7x physical per-TC VMEM)
    try:
        cap = int(pltpu.get_tpu_info().vmem_capacity_bytes)
    except Exception:
        pass
    return max(int(cap * 0.85), 32 << 20)


def _divisor_tile(n_pad, cap):
    """Largest multiple of 128 that divides n_pad and is <= cap (n_pad % 128 == 0)."""
    t = max(128, min(cap, n_pad))
    t -= t % 128
    while t > 128 and n_pad % t:
        t -= 128
    return t


# ----------------------------- kernels -----------------------------------------

def gcn_layer_kernel(a_ref, feat_ref, bias_ref, w_post_ref, bias_post_ref,
                     o_ref, acc_ref):
    """K-blocked: acc += A_tile @ feat_tile; finalize: relu(acc+b) @ W_post + b_post."""
    k = pl.program_id(1)

    @pl.when(k == 0)
    def _():
        acc_ref[...] = jnp.zeros_like(acc_ref)

    acc_ref[...] += jnp.dot(a_ref[...], feat_ref[...],
                            preferred_element_type=jnp.float32)

    @pl.when(k == pl.num_programs(1) - 1)
    def _():
        h = jnp.maximum(acc_ref[...] + bias_ref[...], 0.0)        # f32 bias + ReLU
        y = jnp.dot(h.astype(jnp.bfloat16), w_post_ref[...],
                    preferred_element_type=jnp.float32) + bias_post_ref[...]
        o_ref[...] = y.astype(o_ref.dtype)


def gcn_fused_kernel(a_ref, xw1_ref, b1_ref, w2_ref, b2_ref, w3_ref, b3_ref, o_ref):
    """Whole network in one call (small graphs): A_hat is read from HBM once."""
    h1 = jnp.maximum(
        jnp.dot(a_ref[...], xw1_ref[...], preferred_element_type=jnp.float32)
        + b1_ref[...], 0.0)
    h1w2 = jnp.dot(h1.astype(jnp.bfloat16), w2_ref[...],
                   preferred_element_type=jnp.float32)
    h2 = jnp.maximum(
        jnp.dot(a_ref[...], h1w2.astype(jnp.bfloat16),
                preferred_element_type=jnp.float32) + b2_ref[...], 0.0)
    o_ref[...] = jnp.dot(h2.astype(jnp.bfloat16), w3_ref[...],
                         preferred_element_type=jnp.float32) + b3_ref[...]


# ----------------------------- wrappers -----------------------------------------

def _blocked_layer(a_p, feat_p, bias_p, w_post_p, bias_post_p, out_dtype,
                   tm, tk, vmem_limit):
    n_pad = a_p.shape[0]
    h_in = feat_p.shape[1]
    f_out = w_post_p.shape[1]
    grid = (n_pad // tm, n_pad // tk)
    num_i = grid[0]

    flops = 2 * n_pad * n_pad * h_in + 2 * n_pad * h_in * f_out
    bytes_accessed = (n_pad * n_pad * 2                     # A, read once
                      + num_i * n_pad * h_in * 2            # streamed feature tiles
                      + h_in * f_out * 2                     # W_post (resident, once)
                      + (h_in + f_out) * 4                   # biases (once)
                      + n_pad * f_out * jnp.dtype(out_dtype).itemsize)

    return pl.pallas_call(
        gcn_layer_kernel,
        out_shape=jax.ShapeDtypeStruct((n_pad, f_out), out_dtype),
        grid=grid,
        in_specs=[
            pl.BlockSpec((tm, tk), lambda i, k: (i, k)),        # A tile
            pl.BlockSpec((tk, h_in), lambda i, k: (k, 0)),      # feature K tile
            pl.BlockSpec((1, h_in), lambda i, k: (0, 0)),       # pre-activation bias
            pl.BlockSpec((h_in, f_out), lambda i, k: (0, 0)),   # post weight
            pl.BlockSpec((1, f_out), lambda i, k: (0, 0)),      # post bias
        ],
        out_specs=pl.BlockSpec((tm, f_out), lambda i, k: (i, 0)),
        scratch_shapes=[pltpu.VMEM((tm, h_in), jnp.float32)],
        compiler_params=pltpu.CompilerParams(
            dimension_semantics=("parallel", "arbitrary"),
            vmem_limit_bytes=vmem_limit),
        cost_estimate=pl.CostEstimate(flops=int(flops), transcendentals=0,
                                      bytes_accessed=int(bytes_accessed)),
    )(a_p, feat_p, bias_p, w_post_p, bias_post_p)


def component_placement_gnn(a_hat, x, params, *, tm_cap=512, tk_cap=2048,
                            force_blocked=False):
    """Forward pass. a_hat: dense normalized adjacency (N,N) f32; x: (N,IN) f32."""
    w1, b1, w2, b2, w3, b3 = params
    n = x.shape[0]
    hid = w1.shape[1]
    out_dim = w3.shape[1]

    f32 = jnp.float32
    n_pad = _round_up(n, 128)            # pad N only to 128, never to tm
    h_pad = _round_up(hid, 128)
    out_pad = _round_up(out_dim, 128)

    budget = _vmem_budget_bytes()

    # Padded bf16 MXU operands (f32 accumulation in-kernel); zero padding is inert.
    a_p = _pad2d(a_hat.astype(f32), n_pad, n_pad).astype(jnp.bfloat16)
    xw1 = x.astype(f32) @ w1.astype(f32)                 # tiny XLA matmul, f32
    xw1_p = _pad2d(xw1, n_pad, h_pad).astype(jnp.bfloat16)
    w2_p = _pad2d(w2.astype(f32), h_pad, h_pad).astype(jnp.bfloat16)
    w3_p = _pad2d(w3.astype(f32), h_pad, out_pad).astype(jnp.bfloat16)
    b1_p = _pad2d(b1.astype(f32).reshape(1, -1), 1, h_pad)
    b2_p = _pad2d(b2.astype(f32).reshape(1, -1), 1, h_pad)
    b3_p = _pad2d(b3.astype(f32).reshape(1, -1), 1, out_pad)
    zero_post = jnp.zeros((1, h_pad), f32)

    # ---- fused single-call path for small graphs (A read once, H1 never in HBM) ----
    fused_need = (2 * n_pad * n_pad                      # A bf16 (single buffered)
                  + 2 * n_pad * h_pad                    # XW1 bf16
                  + 4 * n_pad * out_pad                  # f32 output
                  + 6 * n_pad * h_pad * 4                # in-kernel f32 temporaries
                  + 4 * h_pad * (h_pad + out_pad)        # weights / biases
                  + (4 << 20))                           # Mosaic headroom
    if (not force_blocked) and fused_need <= int(0.8 * budget):
        flops = (4 * n_pad * n_pad * h_pad
                 + 2 * n_pad * h_pad * (h_pad + out_pad))
        bytes_accessed = (2 * n_pad * n_pad + 2 * n_pad * h_pad
                          + 2 * h_pad * (h_pad + out_pad)
                          + 4 * (2 * h_pad + out_pad)
                          + 4 * n_pad * out_pad)
        out = pl.pallas_call(
            gcn_fused_kernel,
            out_shape=jax.ShapeDtypeStruct((n_pad, out_pad), f32),
            compiler_params=pltpu.CompilerParams(vmem_limit_bytes=budget),
            cost_estimate=pl.CostEstimate(flops=int(flops), transcendentals=0,
                                          bytes_accessed=int(bytes_accessed)),
        )(a_p, xw1_p, b1_p, w2_p, b2_p, w3_p, b3_p)
        return out[:n, :out_dim]

    # ---- K-blocked two-call path (VMEM independent of N) ----
    tm = _divisor_tile(n_pad, tm_cap)
    if n_pad >= 256 and n_pad // tm < 2:
        tm = n_pad // 2                  # >=2 row blocks so both v7x TCs get work
    tk = _divisor_tile(n_pad, tk_cap)

    per_step = (2 * tm * tk * 2                          # A tile, double buffered
                + 2 * tk * h_pad * 2                     # feature tile, double buffered
                + 2 * tm * max(h_pad, out_pad) * 4       # output block buffers
                + tm * h_pad * 4)                        # f32 accumulator scratch
    vmem_limit = int(min(max(per_step + (8 << 20), 32 << 20), budget))

    # Call 1 emits H1 @ W2 directly (W2 fused into the finalize, zero post-bias).
    h1w2 = _blocked_layer(a_p, xw1_p, b1_p, w2_p, zero_post, jnp.bfloat16,
                          tm, tk, vmem_limit)
    # Call 2: relu(A @ (H1 W2) + b2) @ W3 + b3.
    out = _blocked_layer(a_p, h1w2, b2_p, w3_p, b3_p, jnp.float32,
                         tm, tk, vmem_limit)
    return out[:n, :out_dim]


def build_normalized_adjacency(edge_index, num_nodes):
    """PyG gcn_norm: add *remaining* self-loops, then D^-1/2 (A+I) D^-1/2."""
    src, dst = edge_index[0], edge_index[1]
    a = jnp.zeros((num_nodes, num_nodes), jnp.float32).at[dst, src].add(1.0)
    has_self = jnp.diag(a) > 0
    a = a + jnp.diag(jnp.where(has_self, 0.0, 1.0))      # don't double existing loops
    deg = jnp.sum(a, axis=1)
    d_inv_sqrt = jnp.where(deg > 0, 1.0 / jnp.sqrt(deg), 0.0)
    return d_inv_sqrt[:, None] * a * d_inv_sqrt[None, :]


# ----------------------------- demo / self-test ---------------------------------

if __name__ == "__main__":
    IN_DIM, HIDDEN, OUT_DIM = 8, 64, 2

    key = jax.random.PRNGKey(0)
    kx1, kx2, k1, k2, k3 = jax.random.split(key, 5)

    # Deterministic synthetic parameters (no checkpoint load).
    w1 = 0.1 * jax.random.normal(k1, (IN_DIM, HIDDEN), dtype=jnp.float32)
    b1 = 0.01 * jnp.arange(HIDDEN, dtype=jnp.float32)
    w2 = 0.1 * jax.random.normal(k2, (HIDDEN, HIDDEN), dtype=jnp.float32)
    b2 = 0.01 * jnp.arange(HIDDEN, dtype=jnp.float32)
    w3 = 0.1 * jax.random.normal(k3, (HIDDEN, OUT_DIM), dtype=jnp.float32)
    b3 = 0.01 * jnp.arange(OUT_DIM, dtype=jnp.float32)
    params = (w1, b1, w2, b2, w3, b3)

    def reference(a_hat, x):
        h = jnp.maximum(a_hat @ (x @ w1) + b1[None, :], 0.0)
        h = jnp.maximum(a_hat @ (h @ w2) + b2[None, :], 0.0)
        return h @ w3 + b3[None, :]

    def ring_graph(n):
        ar = jnp.arange(n, dtype=jnp.int32)
        src = jnp.concatenate([ar, (ar + 1) % n])
        dst = jnp.concatenate([(ar + 1) % n, ar])
        return jnp.stack([src, dst])

    # --- small graph: fused single-kernel path ---
    N1 = 16
    x1 = jax.random.normal(kx1, (N1, IN_DIM), dtype=jnp.float32)
    a1 = build_normalized_adjacency(ring_graph(N1), N1)
    out1 = component_placement_gnn(a1, x1, params)
    jax.block_until_ready(out1)
    ref1 = reference(a1, x1)
    assert out1.shape == (N1, OUT_DIM)
    err1 = float(jnp.max(jnp.abs(out1 - ref1)))
    assert jnp.allclose(out1, ref1, atol=5e-2, rtol=5e-2), f"fused max abs err {err1}"

    # --- larger graph: K-blocked two-call path (exercises the accumulator grid) ---
    N2 = 300
    x2 = jax.random.normal(kx2, (N2, IN_DIM), dtype=jnp.float32)
    a2 = build_normalized_adjacency(ring_graph(N2), N2)
    out2 = component_placement_gnn(a2, x2, params, force_blocked=True, tk_cap=128)
    jax.block_until_ready(out2)
    ref2 = reference(a2, x2)
    assert out2.shape == (N2, OUT_DIM)
    err2 = float(jnp.max(jnp.abs(out2 - ref2)))
    assert jnp.allclose(out2, ref2, atol=5e-2, rtol=5e-2), f"blocked max abs err {err2}"

    print("KERNEL_OK")
</pallas_src>

<mosaic_0001>
module attributes {stable_mosaic.version = 11 : i64} {
  func.func @gcn_fused_kernel(%arg0: memref<128x128xbf16, #tpu.memory_space<vmem>>, %arg1: memref<128x128xbf16, #tpu.memory_space<vmem>>, %arg2: memref<1x128xf32, #tpu.memory_space<vmem>>, %arg3: memref<128x128xbf16, #tpu.memory_space<vmem>>, %arg4: memref<1x128xf32, #tpu.memory_space<vmem>>, %arg5: memref<128x128xbf16, #tpu.memory_space<vmem>>, %arg6: memref<1x128xf32, #tpu.memory_space<vmem>>, %arg7: memref<128x128xf32, #tpu.memory_space<vmem>>) attributes {dimension_semantics = [], scalar_prefetch = 0 : i64, scratch_operands = 0 : i64, tpu.core_type = #tpu.core_type<tc>} {
    %c0 = arith.constant 0 : index
    %c0_0 = arith.constant 0 : index
    %0 = vector.load %arg0[%c0, %c0_0] : memref<128x128xbf16, #tpu.memory_space<vmem>>, vector<128x128xbf16>
    %c0_1 = arith.constant 0 : index
    %c0_2 = arith.constant 0 : index
    %1 = vector.load %arg1[%c0_1, %c0_2] : memref<128x128xbf16, #tpu.memory_space<vmem>>, vector<128x128xbf16>
    %cst = arith.constant dense<0.000000e+00> : vector<128x128xf32>
    %2 = tpu.matmul %0, %1, %cst {dimension_numbers = #tpu.dot_dimension_numbers<[1], [0], [0], [1], [0, 0, 1, 1], [], []>} : vector<128x128xbf16>, vector<128x128xbf16>, vector<128x128xf32> -> vector<128x128xf32>
    %c0_3 = arith.constant 0 : index
    %c0_4 = arith.constant 0 : index
    %3 = vector.load %arg2[%c0_3, %c0_4] : memref<1x128xf32, #tpu.memory_space<vmem>>, vector<1x128xf32>
    %4 = vector.broadcast %3 : vector<1x128xf32> to vector<128x128xf32>
    %5 = arith.addf %2, %4 : vector<128x128xf32>
    %cst_5 = arith.constant 0.000000e+00 : f32
    %6 = vector.broadcast %cst_5 : f32 to vector<128x128xf32>
    %7 = arith.maximumf %5, %6 : vector<128x128xf32>
    %8 = arith.truncf %7 : vector<128x128xf32> to vector<128x128xbf16>
    %c0_6 = arith.constant 0 : index
    %c0_7 = arith.constant 0 : index
    %9 = vector.load %arg3[%c0_6, %c0_7] : memref<128x128xbf16, #tpu.memory_space<vmem>>, vector<128x128xbf16>
    %cst_8 = arith.constant dense<0.000000e+00> : vector<128x128xf32>
    %10 = tpu.matmul %8, %9, %cst_8 {dimension_numbers = #tpu.dot_dimension_numbers<[1], [0], [0], [1], [0, 0, 1, 1], [], []>} : vector<128x128xbf16>, vector<128x128xbf16>, vector<128x128xf32> -> vector<128x128xf32>
    %c0_9 = arith.constant 0 : index
    %c0_10 = arith.constant 0 : index
    %11 = vector.load %arg0[%c0_9, %c0_10] : memref<128x128xbf16, #tpu.memory_space<vmem>>, vector<128x128xbf16>
    %12 = arith.truncf %10 : vector<128x128xf32> to vector<128x128xbf16>
    %cst_11 = arith.constant dense<0.000000e+00> : vector<128x128xf32>
    %13 = tpu.matmul %11, %12, %cst_11 {dimension_numbers = #tpu.dot_dimension_numbers<[1], [0], [0], [1], [0, 0, 1, 1], [], []>} : vector<128x128xbf16>, vector<128x128xbf16>, vector<128x128xf32> -> vector<128x128xf32>
    %c0_12 = arith.constant 0 : index
    %c0_13 = arith.constant 0 : index
    %14 = vector.load %arg4[%c0_12, %c0_13] : memref<1x128xf32, #tpu.memory_space<vmem>>, vector<1x128xf32>
    %15 = vector.broadcast %14 : vector<1x128xf32> to vector<128x128xf32>
    %16 = arith.addf %13, %15 : vector<128x128xf32>
    %cst_14 = arith.constant 0.000000e+00 : f32
    %17 = vector.broadcast %cst_14 : f32 to vector<128x128xf32>
    %18 = arith.maximumf %16, %17 : vector<128x128xf32>
    %19 = arith.truncf %18 : vector<128x128xf32> to vector<128x128xbf16>
    %c0_15 = arith.constant 0 : index
    %c0_16 = arith.constant 0 : index
    %20 = vector.load %arg5[%c0_15, %c0_16] : memref<128x128xbf16, #tpu.memory_space<vmem>>, vector<128x128xbf16>
    %cst_17 = arith.constant dense<0.000000e+00> : vector<128x128xf32>
    %21 = tpu.matmul %19, %20, %cst_17 {dimension_numbers = #tpu.dot_dimension_numbers<[1], [0], [0], [1], [0, 0, 1, 1], [], []>} : vector<128x128xbf16>, vector<128x128xbf16>, vector<128x128xf32> -> vector<128x128xf32>
    %c0_18 = arith.constant 0 : index
    %c0_19 = arith.constant 0 : index
    %22 = vector.load %arg6[%c0_18, %c0_19] : memref<1x128xf32, #tpu.memory_space<vmem>>, vector<1x128xf32>
    %23 = vector.broadcast %22 : vector<1x128xf32> to vector<128x128xf32>
    %24 = arith.addf %21, %23 : vector<128x128xf32>
    %c0_20 = arith.constant 0 : index
    %c0_21 = arith.constant 0 : index
    %25 = vector.load %arg7[%c0_20, %c0_21] : memref<128x128xf32, #tpu.memory_space<vmem>>, vector<128x128xf32>
    tpu.vector_store %arg7[%c0_20, %c0_21], %24 {strides = array<i32>} : memref<128x128xf32, #tpu.memory_space<vmem>>, vector<128x128xf32>,
    return
  }
}

</mosaic_0001>

<llo_original>
// kernel: tpu_custom_call.1
$region0: #{tpu_custom_call.1}
  #allocation0 [shape = 'u32[]', space=smem, size = 0x4, offset = 0x4, fixed_abs, tag = 'smem constant byte address 0x4 - core index']
  #allocation1 [shape = 'u32[144,128]{1,0:T(1,128)}', space=vmem, size = 0x12000, scoped, tag = 'internal scratch']
  %s0 = inlined_call_operand.hbm [shape: bf16[128,128], index: 0, kind: input, shape index: {}]
  %s1 = inlined_call_operand.hbm [shape: bf16[128,128], index: 1, kind: input, shape index: {}]
  %s2 = inlined_call_operand.vmem [shape: f32[1,128], index: 2, kind: input, shape index: {}]
  %s3 = inlined_call_operand.hbm [shape: bf16[128,128], index: 3, kind: input, shape index: {}]
  %s4 = inlined_call_operand.vmem [shape: f32[1,128], index: 4, kind: input, shape index: {}]
  %s5 = inlined_call_operand.hbm [shape: bf16[128,128], index: 5, kind: input, shape index: {}]
  %s6 = inlined_call_operand.vmem [shape: f32[1,128], index: 6, kind: input, shape index: {}]
  %s7 = inlined_call_operand.hbm [shape: f32[128,128], index: 7, kind: output, shape index: {}]
  %s8 = sld [smem:[#allocation0]]
  $region54: #{tpu_custom_call.1} parent=0
    _
  %s10 = ssub.s32 1, %s8
  %s11 = scalar_select 0, %s10, %s8
  $region1: #{tpu_custom_call.1} parent=0
    #allocation2 [shape = 'u8[32768]{0}', space=vmem, size = 0x8000, scoped, tag = 'input window, operand 0, single buffered']
    #allocation3 [shape = 's32[1]{0}', space=sflag, size = 0x4, scoped, tag = 'scoped memory for tpu_custom_call.1']
    #allocation4 [shape = 's32[1]{0}', space=sflag, size = 0x4, scoped, tag = 'scoped memory for tpu_custom_call.1']
    #allocation5 [shape = 'u8[32768]{0}', space=vmem, size = 0x8000, scoped, tag = 'input window, operand 1, single buffered']
    #allocation6 [shape = 's32[1]{0}', space=sflag, size = 0x4, scoped, tag = 'scoped memory for tpu_custom_call.1']
    #allocation7 [shape = 'u8[32768]{0}', space=vmem, size = 0x8000, scoped, tag = 'input window, operand 3, single buffered']
    #allocation8 [shape = 'u8[32768]{0}', space=vmem, size = 0x8000, scoped, tag = 'input window, operand 5, single buffered']
    #allocation9 [shape = 's32[1]{0}', space=sflag, size = 0x4, scoped, tag = 'scoped memory for tpu_custom_call.1']
    #allocation10 [shape = 'u8[65536]{0}', space=vmem, size = 0x10000, scoped, tag = 'output window, operand 0, single buffered']
    %12 = vsyncpa [#allocation3], 0
    %13 = vsyncpa [#allocation6], 0
    %14 = vsyncpa [#allocation9], 0
    %15 = vsyncpa [#allocation4], 0
    // Predicated region
    $region2: #{tpu_custom_call.1} parent=1 // pred_check
      _
    $region3: #{tpu_custom_call.1} parent=1 // pred_check_branch
      %17 = sbr.rel (0) target = $region5
    $region4: #{tpu_custom_call.1} parent=1 // pred_region
      %s19 = ssub.s32 1024, 1024
      %20 = vsyncadd [#allocation3], %s19
      %s21 = sshll.u32 [#allocation2], 4
      %s22 = int_to_ptr.vmem [resolvable:$true] %s21
      %27 = dma.hbm_to_vmem [thread:$0]  %s0, 1024, %s22, [#allocation3], 64, 64, 4
    $region5: #{tpu_custom_call.1} parent=1 // pred_fallthru
      _
    // Predicated region
    $region6: #{tpu_custom_call.1} parent=1 // pred_check
      _
    $region7: #{tpu_custom_call.1} parent=1 // pred_check_branch
      %29 = sbr.rel (0) target = $region9
    $region8: #{tpu_custom_call.1} parent=1 // pred_region
      %s31 = ssub.s32 1024, 1024
      %32 = vsyncadd [#allocation6], %s31
      %s33 = sshll.u32 [#allocation5], 4
      %s34 = int_to_ptr.vmem [resolvable:$true] %s33
      %39 = dma.hbm_to_vmem [thread:$0]  %s1, 1024, %s34, [#allocation6], 64, 64, 4
    $region9: #{tpu_custom_call.1} parent=1 // pred_fallthru
      _
    // Predicated region
    $region10: #{tpu_custom_call.1} parent=1 // pred_check
      _
    $region11: #{tpu_custom_call.1} parent=1 // pred_check_branch
      %41 = sbr.rel (0) target = $region13
    $region12: #{tpu_custom_call.1} parent=1 // pred_region
      _
    $region13: #{tpu_custom_call.1} parent=1 // pred_fallthru
      _
    // Predicated region
    $region14: #{tpu_custom_call.1} parent=1 // pred_check
      _
    $region15: #{tpu_custom_call.1} parent=1 // pred_check_branch
      %43 = sbr.rel (0) target = $region17
    $region16: #{tpu_custom_call.1} parent=1 // pred_region
      %s45 = ssub.s32 1024, 1024
      %46 = vsyncadd [#allocation6], %s45
      %s47 = sshll.u32 [#allocation7], 4
      %s48 = int_to_ptr.vmem [resolvable:$true] %s47
      %53 = dma.hbm_to_vmem [thread:$0]  %s3, 1024, %s48, [#allocation6], 64, 64, 4
    $region17: #{tpu_custom_call.1} parent=1 // pred_fallthru
      _
    // Predicated region
    $region18: #{tpu_custom_call.1} parent=1 // pred_check
      _
    $region19: #{tpu_custom_call.1} parent=1 // pred_check_branch
      %55 = sbr.rel (0) target = $region21
    $region20: #{tpu_custom_call.1} parent=1 // pred_region
      _
    $region21: #{tpu_custom_call.1} parent=1 // pred_fallthru
      _
    // Predicated region
    $region22: #{tpu_custom_call.1} parent=1 // pred_check
      _
    $region23: #{tpu_custom_call.1} parent=1 // pred_check_branch
      %57 = sbr.rel (0) target = $region25
    $region24: #{tpu_custom_call.1} parent=1 // pred_region
      %s59 = ssub.s32 1024, 1024
      %60 = vsyncadd [#allocation9], %s59
      %s61 = sshll.u32 [#allocation8], 4
      %s62 = int_to_ptr.vmem [resolvable:$true] %s61
      %67 = dma.hbm_to_vmem [thread:$0]  %s5, 1024, %s62, [#allocation9], 64, 64, 4
    $region25: #{tpu_custom_call.1} parent=1 // pred_fallthru
      _
    // Predicated region
    $region26: #{tpu_custom_call.1} parent=1 // pred_check
      _
    $region27: #{tpu_custom_call.1} parent=1 // pred_check_branch
      %69 = sbr.rel (0) target = $region29
    $region28: #{tpu_custom_call.1} parent=1 // pred_region
      _
    $region29: #{tpu_custom_call.1} parent=1 // pred_fallthru
      _
    // Predicated region
    $region30: #{tpu_custom_call.1} parent=1 // pred_check
      _
    $region31: #{tpu_custom_call.1} parent=1 // pred_check_branch
      %71 = sbr.rel (0) target = $region33
    $region32: #{tpu_custom_call.1} parent=1 // pred_region
      %72 = dma.done [#allocation3], 1024
    $region33: #{tpu_custom_call.1} parent=1 // pred_fallthru
      _
    // Predicated region
    $region34: #{tpu_custom_call.1} parent=1 // pred_check
      _
    $region35: #{tpu_custom_call.1} parent=1 // pred_check_branch
      %74 = sbr.rel (0) target = $region37
    $region36: #{tpu_custom_call.1} parent=1 // pred_region
      %75 = dma.done [#allocation6], 1024
    $region37: #{tpu_custom_call.1} parent=1 // pred_fallthru
      _
    // Predicated region
    $region38: #{tpu_custom_call.1} parent=1 // pred_check
      _
    $region39: #{tpu_custom_call.1} parent=1 // pred_check_branch
      %77 = sbr.rel (0) target = $region41
    $region40: #{tpu_custom_call.1} parent=1 // pred_region
      %78 = dma.done [#allocation6], 1024
    $region41: #{tpu_custom_call.1} parent=1 // pred_fallthru
      _
    // Predicated region
    $region42: #{tpu_custom_call.1} parent=1 // pred_check
      _
    $region43: #{tpu_custom_call.1} parent=1 // pred_check_branch
      %80 = sbr.rel (0) target = $region45
    $region44: #{tpu_custom_call.1} parent=1 // pred_region
      %81 = dma.done [#allocation9], 1024
    $region45: #{tpu_custom_call.1} parent=1 // pred_fallthru
      _
    %v83 = vld [vmem:[#allocation2] sm:$0xf]
    %v84 = vld [vmem:[#allocation2 + $0x4] sm:$0xf]
    %v85 = vld [vmem:[#allocation2 + $0x8] sm:$0xf]
    %v86 = vld [vmem:[#allocation2 + $0xc] sm:$0xf]
    %v87 = vld [vmem:[#allocation2 + $0x10] sm:$0xf]
    %v88 = vld [vmem:[#allocation2 + $0x14] sm:$0xf]
    %v89 = vld [vmem:[#allocation2 + $0x18] sm:$0xf]
    %v90 = vld [vmem:[#allocation2 + $0x1c] sm:$0xf]
    %v91 = vld [vmem:[#allocation2 + $0x20] sm:$0xf]
    %v92 = vld [vmem:[#allocation2 + $0x24] sm:$0xf]
    %v93 = vld [vmem:[#allocation2 + $0x28] sm:$0xf]
    %v94 = vld [vmem:[#allocation2 + $0x2c] sm:$0xf]
    %v95 = vld [vmem:[#allocation2 + $0x30] sm:$0xf]
    %v96 = vld [vmem:[#allocation2 + $0x34] sm:$0xf]
    %v97 = vld [vmem:[#allocation2 + $0x38] sm:$0xf]
    %v98 = vld [vmem:[#allocation2 + $0x3c] sm:$0xf]
    %v99 = vld [vmem:[#allocation5] sm:$0xf]
    %v100 = vld [vmem:[#allocation5 + $0x4] sm:$0xf]
    %v101 = vld [vmem:[#allocation5 + $0x8] sm:$0xf]
    %v102 = vld [vmem:[#allocation5 + $0xc] sm:$0xf]
    %v103 = vld [vmem:[#allocation5 + $0x10] sm:$0xf]
    %v104 = vld [vmem:[#allocation5 + $0x14] sm:$0xf]
    %v105 = vld [vmem:[#allocation5 + $0x18] sm:$0xf]
    %v106 = vld [vmem:[#allocation5 + $0x1c] sm:$0xf]
    %v107 = vld [vmem:[#allocation5 + $0x20] sm:$0xf]
    %v108 = vld [vmem:[#allocation5 + $0x24] sm:$0xf]
    %v109 = vld [vmem:[#allocation5 + $0x28] sm:$0xf]
    %v110 = vld [vmem:[#allocation5 + $0x2c] sm:$0xf]
    %v111 = vld [vmem:[#allocation5 + $0x30] sm:$0xf]
    %v112 = vld [vmem:[#allocation5 + $0x34] sm:$0xf]
    %v113 = vld [vmem:[#allocation5 + $0x38] sm:$0xf]
    %v114 = vld [vmem:[#allocation5 + $0x3c] sm:$0xf]
    %v115 = vld [vmem:[%s2] sm:$0x1]
    %v117 = vlaneseq
    %v118 = vshrl.u32 %v117, 7
    %v119 = vsub.s32 0, %v118
    %v120 = vrot.slane %v115, %v119
    %v138 = vunpack.c.l.b16 %v83
    %v139 = vunpack.c.l.b16 %v84
    %v140 = vunpack.c.l.b16 %v85
    %v141 = vunpack.c.l.b16 %v86
    %v142 = vunpack.c.l.b16 %v87
    %v143 = vunpack.c.l.b16 %v88
    %v144 = vunpack.c.l.b16 %v89
    %v145 = vunpack.c.l.b16 %v90
    %v146 = vunpack.c.l.b16 %v91
    %v147 = vunpack.c.l.b16 %v92
    %v148 = vunpack.c.l.b16 %v93
    %v149 = vunpack.c.l.b16 %v94
    %v150 = vunpack.c.l.b16 %v95
    %v151 = vunpack.c.l.b16 %v96
    %v152 = vunpack.c.l.b16 %v97
    %v153 = vunpack.c.l.b16 %v98
    %v154 = vpack.c.b16 %v139, %v138
    %v155 = vpack.c.b16 %v141, %v140
    %v156 = vpack.c.b16 %v143, %v142
    %v157 = vpack.c.b16 %v145, %v144
    %v158 = vpack.c.b16 %v147, %v146
    %v159 = vpack.c.b16 %v149, %v148
    %v160 = vpack.c.b16 %v151, %v150
    %v161 = vpack.c.b16 %v153, %v152
    %v186 = vunpack.c.l.b16 %v99
    %v187 = vunpack.c.l.b16 %v100
    %v188 = vunpack.c.l.b16 %v101
    %v189 = vunpack.c.l.b16 %v102
    %v190 = vunpack.c.l.b16 %v103
    %v191 = vunpack.c.l.b16 %v104
    %v192 = vunpack.c.l.b16 %v105
    %v193 = vunpack.c.l.b16 %v106
    %v194 = vunpack.c.l.b16 %v107
    %v195 = vunpack.c.l.b16 %v108
    %v196 = vunpack.c.l.b16 %v109
    %v197 = vunpack.c.l.b16 %v110
    %v198 = vunpack.c.l.b16 %v111
    %v199 = vunpack.c.l.b16 %v112
    %v200 = vunpack.c.l.b16 %v113
    %v201 = vunpack.c.l.b16 %v114
    %v202 = vpack.c.b16 %v187, %v186
    %v203 = vpack.c.b16 %v189, %v188
    %v204 = vpack.c.b16 %v191, %v190
    %v205 = vpack.c.b16 %v193, %v192
    %v206 = vpack.c.b16 %v195, %v194
    %v207 = vpack.c.b16 %v197, %v196
    %v208 = vpack.c.b16 %v199, %v198
    %v209 = vpack.c.b16 %v201, %v200
    %218 = vmatprep.subr.bf16.mxu0 0
    %219 = vmatpush1.bf16.msra.mxu0 %v202
    %220 = vmatprep.subr.bf16.mxu0 0
    %221 = vmatpush1.bf16.msra.mxu0 %v203
    %222 = vmatprep.subr.bf16.mxu0 0
    %223 = vmatpush1.bf16.msra.mxu0 %v204
    %224 = vmatprep.subr.bf16.mxu0 0
    %225 = vmatpush1.bf16.msra.mxu0 %v205
    %226 = vmatprep.subr.bf16.mxu0 0
    %227 = vmatpush1.bf16.msra.mxu0 %v206
    %228 = vmatprep.subr.bf16.mxu0 0
    %229 = vmatpush1.bf16.msra.mxu0 %v207
    %230 = vmatprep.subr.bf16.mxu0 0
    %231 = vmatpush1.bf16.msra.mxu0 %v208
    %232 = vmatprep.subr.bf16.mxu0 0
    %233 = vmatpush1.bf16.msra.mxu0 %v209
    %234 = vmatprep.subr.bf16.mxu0 0
    %235 = vmatpush1.bf16.msra.mxu0 0
    %236 = vmatprep.subr.bf16.mxu0 0
    %237 = vmatpush1.bf16.msra.mxu0 0
    %238 = vmatprep.subr.bf16.mxu0 0
    %239 = vmatpush1.bf16.msra.mxu0 0
    %240 = vmatprep.subr.bf16.mxu0 0
    %241 = vmatpush1.bf16.msra.mxu0 0
    %242 = vmatprep.subr.bf16.mxu0 0
    %243 = vmatpush1.bf16.msra.mxu0 0
    %244 = vmatprep.subr.bf16.mxu0 0
    %245 = vmatpush1.bf16.msra.mxu0 0
    %246 = vmatprep.subr.bf16.mxu0 0
    %247 = vmatpush1.bf16.msra.mxu0 0
    %248 = vmatprep.subr.bf16.mxu0 0
    %249 = vmatpush1.bf16.msra.mxu0 0
    %250 = vmatprep.mubr.bf16.mxu0 0
    %251 = vmatmul.mubr.bf16.gmra.mrb[0].mxu0 %v154
    %v252 = vpop.f32.mrb[0].mxu0
    %v253 = vadd.f32 %v120, %v252
    %v254 = vpop.f32.mrb[0].mxu0
    %v255 = vpop.f32.mrb[0].mxu0
    %v256 = vadd.f32 %v120, %v255
    %v257 = vpop.f32.mrb[0].mxu0
    %258 = vmatprep.mubr.bf16.mxu0 0
    %259 = vmatmul.mubr.bf16.gmra.mrb[0].mxu0 %v155
    %v260 = vpop.f32.mrb[0].mxu0
    %v261 = vadd.f32 %v120, %v260
    %v262 = vpop.f32.mrb[0].mxu0
    %v263 = vpop.f32.mrb[0].mxu0
    %v264 = vadd.f32 %v120, %v263
    %v265 = vpop.f32.mrb[0].mxu0
    %266 = vmatprep.mubr.bf16.mxu0 0
    %267 = vmatmul.mubr.bf16.gmra.mrb[0].mxu0 %v156
    %v268 = vpop.f32.mrb[0].mxu0
    %v269 = vadd.f32 %v120, %v268
    %v270 = vpop.f32.mrb[0].mxu0
    %v271 = vpop.f32.mrb[0].mxu0
    %v272 = vadd.f32 %v120, %v271
    %v273 = vpop.f32.mrb[0].mxu0
    %274 = vmatprep.mubr.bf16.mxu0 0
    %275 = vmatmul.mubr.bf16.gmra.mrb[0].mxu0 %v157
    %v276 = vpop.f32.mrb[0].mxu0
    %v277 = vadd.f32 %v120, %v276
    %v278 = vpop.f32.mrb[0].mxu0
    %v279 = vpop.f32.mrb[0].mxu0
    %v280 = vadd.f32 %v120, %v279
    %v281 = vpop.f32.mrb[0].mxu0
    %282 = vmatprep.mubr.bf16.mxu0 0
    %283 = vmatmul.mubr.bf16.gmra.mrb[0].mxu0 %v158
    %v284 = vpop.f32.mrb[0].mxu0
    %v285 = vadd.f32 %v120, %v284
    %v286 = vpop.f32.mrb[0].mxu0
    %v287 = vpop.f32.mrb[0].mxu0
    %v288 = vadd.f32 %v120, %v287
    %v289 = vpop.f32.mrb[0].mxu0
    %290 = vmatprep.mubr.bf16.mxu0 0
    %291 = vmatmul.mubr.bf16.gmra.mrb[0].mxu0 %v159
    %v292 = vpop.f32.mrb[0].mxu0
    %v293 = vadd.f32 %v120, %v292
    %v294 = vpop.f32.mrb[0].mxu0
    %v295 = vpop.f32.mrb[0].mxu0
    %v296 = vadd.f32 %v120, %v295
    %v297 = vpop.f32.mrb[0].mxu0
    %298 = vmatprep.mubr.bf16.mxu0 0
    %299 = vmatmul.mubr.bf16.gmra.mrb[0].mxu0 %v160
    %v300 = vpop.f32.mrb[0].mxu0
    %v301 = vadd.f32 %v120, %v300
    %v302 = vpop.f32.mrb[0].mxu0
    %v303 = vpop.f32.mrb[0].mxu0
    %v304 = vadd.f32 %v120, %v303
    %v305 = vpop.f32.mrb[0].mxu0
    %306 = vmatprep.mubr.bf16.mxu0 0
    %307 = vmatmul.mubr.bf16.gmra.mrb[0].mxu0 %v161
    %v308 = vpop.f32.mrb[0].mxu0
    %v309 = vadd.f32 %v120, %v308
    %v310 = vpop.f32.mrb[0].mxu0
    %v311 = vpop.f32.mrb[0].mxu0
    %v312 = vadd.f32 %v120, %v311
    %v313 = vpop.f32.mrb[0].mxu0
    %314 = vdwg.mxu0
    %v315 = vmax.f32 %v253, 0.0
    %v316 = vmax.f32 %v256, 0.0
    %v317 = vmax.f32 %v261, 0.0
    %v318 = vmax.f32 %v264, 0.0
    %v319 = vmax.f32 %v269, 0.0
    %v320 = vmax.f32 %v272, 0.0
    %v321 = vmax.f32 %v277, 0.0
    %v322 = vmax.f32 %v280, 0.0
    %v323 = vmax.f32 %v285, 0.0
    %v324 = vmax.f32 %v288, 0.0
    %v325 = vmax.f32 %v293, 0.0
    %v326 = vmax.f32 %v296, 0.0
    %v327 = vmax.f32 %v301, 0.0
    %v328 = vmax.f32 %v304, 0.0
    %v329 = vmax.f32 %v309, 0.0
    %v330 = vmax.f32 %v312, 0.0
    %v331 = vpack.c.bf16 %v316, %v315
    %v332 = vpack.c.bf16 %v318, %v317
    %v333 = vpack.c.bf16 %v320, %v319
    %v334 = vpack.c.bf16 %v322, %v321
    %v335 = vpack.c.bf16 %v324, %v323
    %v336 = vpack.c.bf16 %v326, %v325
    %v337 = vpack.c.bf16 %v328, %v327
    %v338 = vpack.c.bf16 %v330, %v329
    %v339 = vld [vmem:[#allocation7] sm:$0xf]
    %v340 = vld [vmem:[#allocation7 + $0x4] sm:$0xf]
    %v341 = vld [vmem:[#allocation7 + $0x8] sm:$0xf]
    %v342 = vld [vmem:[#allocation7 + $0xc] sm:$0xf]
    %v343 = vld [vmem:[#allocation7 + $0x10] sm:$0xf]
    %v344 = vld [vmem:[#allocation7 + $0x14] sm:$0xf]
    %v345 = vld [vmem:[#allocation7 + $0x18] sm:$0xf]
    %v346 = vld [vmem:[#allocation7 + $0x1c] sm:$0xf]
    %v347 = vld [vmem:[#allocation7 + $0x20] sm:$0xf]
    %v348 = vld [vmem:[#allocation7 + $0x24] sm:$0xf]
    %v349 = vld [vmem:[#allocation7 + $0x28] sm:$0xf]
    %v350 = vld [vmem:[#allocation7 + $0x2c] sm:$0xf]
    %v351 = vld [vmem:[#allocation7 + $0x30] sm:$0xf]
    %v352 = vld [vmem:[#allocation7 + $0x34] sm:$0xf]
    %v353 = vld [vmem:[#allocation7 + $0x38] sm:$0xf]
    %v354 = vld [vmem:[#allocation7 + $0x3c] sm:$0xf]
    %v371 = vunpack.c.l.b16 %v339
    %v372 = vunpack.c.l.b16 %v340
    %v373 = vunpack.c.l.b16 %v341
    %v374 = vunpack.c.l.b16 %v342
    %v375 = vunpack.c.l.b16 %v343
    %v376 = vunpack.c.l.b16 %v344
    %v377 = vunpack.c.l.b16 %v345
    %v378 = vunpack.c.l.b16 %v346
    %v379 = vunpack.c.l.b16 %v347
    %v380 = vunpack.c.l.b16 %v348
    %v381 = vunpack.c.l.b16 %v349
    %v382 = vunpack.c.l.b16 %v350
    %v383 = vunpack.c.l.b16 %v351
    %v384 = vunpack.c.l.b16 %v352
    %v385 = vunpack.c.l.b16 %v353
    %v386 = vunpack.c.l.b16 %v354
    %v387 = vpack.c.b16 %v372, %v371
    %v388 = vpack.c.b16 %v374, %v373
    %v389 = vpack.c.b16 %v376, %v375
    %v390 = vpack.c.b16 %v378, %v377
    %v391 = vpack.c.b16 %v380, %v379
    %v392 = vpack.c.b16 %v382, %v381
    %v393 = vpack.c.b16 %v384, %v383
    %v394 = vpack.c.b16 %v386, %v385
    %403 = vmatprep.subr.bf16.mxu0 0
    %404 = vmatpush1.bf16.msra.mxu0 %v387
    %405 = vmatprep.subr.bf16.mxu0 0
    %406 = vmatpush1.bf16.msra.mxu0 %v388
    %407 = vmatprep.subr.bf16.mxu0 0
    %408 = vmatpush1.bf16.msra.mxu0 %v389
    %409 = vmatprep.subr.bf16.mxu0 0
    %410 = vmatpush1.bf16.msra.mxu0 %v390
    %411 = vmatprep.subr.bf16.mxu0 0
    %412 = vmatpush1.bf16.msra.mxu0 %v391
    %413 = vmatprep.subr.bf16.mxu0 0
    %414 = vmatpush1.bf16.msra.mxu0 %v392
    %415 = vmatprep.subr.bf16.mxu0 0
    %416 = vmatpush1.bf16.msra.mxu0 %v393
    %417 = vmatprep.subr.bf16.mxu0 0
    %418 = vmatpush1.bf16.msra.mxu0 %v394
    %419 = vmatprep.subr.bf16.mxu0 0
    %420 = vmatpush1.bf16.msra.mxu0 0
    %421 = vmatprep.subr.bf16.mxu0 0
    %422 = vmatpush1.bf16.msra.mxu0 0
    %423 = vmatprep.subr.bf16.mxu0 0
    %424 = vmatpush1.bf16.msra.mxu0 0
    %425 = vmatprep.subr.bf16.mxu0 0
    %426 = vmatpush1.bf16.msra.mxu0 0
    %427 = vmatprep.subr.bf16.mxu0 0
    %428 = vmatpush1.bf16.msra.mxu0 0
    %429 = vmatprep.subr.bf16.mxu0 0
    %430 = vmatpush1.bf16.msra.mxu0 0
    %431 = vmatprep.subr.bf16.mxu0 0
    %432 = vmatpush1.bf16.msra.mxu0 0
    %433 = vmatprep.subr.bf16.mxu0 0
    %434 = vmatpush1.bf16.msra.mxu0 0
    %435 = vmatprep.mubr.bf16.mxu0 0
    %436 = vmatmul.mubr.bf16.gmra.mrb[0].mxu0 %v331
    %v437 = vpop.f32.mrb[0].mxu0
    %v438 = vadd.f32 0.0, %v437
    %v439 = vpop.f32.mrb[0].mxu0
    %v440 = vpop.f32.mrb[0].mxu0
    %v441 = vadd.f32 0.0, %v440
    %v442 = vpop.f32.mrb[0].mxu0
    %443 = vmatprep.mubr.bf16.mxu0 0
    %444 = vmatmul.mubr.bf16.gmra.mrb[0].mxu0 %v332
    %v445 = vpop.f32.mrb[0].mxu0
    %v446 = vadd.f32 0.0, %v445
    %v447 = vpop.f32.mrb[0].mxu0
    %v448 = vpop.f32.mrb[0].mxu0
    %v449 = vadd.f32 0.0, %v448
    %v450 = vpop.f32.mrb[0].mxu0
    %451 = vmatprep.mubr.bf16.mxu0 0
    %452 = vmatmul.mubr.bf16.gmra.mrb[0].mxu0 %v333
    %v453 = vpop.f32.mrb[0].mxu0
    %v454 = vadd.f32 0.0, %v453
    %v455 = vpop.f32.mrb[0].mxu0
    %v456 = vpop.f32.mrb[0].mxu0
    %v457 = vadd.f32 0.0, %v456
    %v458 = vpop.f32.mrb[0].mxu0
    %459 = vmatprep.mubr.bf16.mxu0 0
    %460 = vmatmul.mubr.bf16.gmra.mrb[0].mxu0 %v334
    %v461 = vpop.f32.mrb[0].mxu0
    %v462 = vadd.f32 0.0, %v461
    %v463 = vpop.f32.mrb[0].mxu0
    %v464 = vpop.f32.mrb[0].mxu0
    %v465 = vadd.f32 0.0, %v464
    %v466 = vpop.f32.mrb[0].mxu0
    %467 = vmatprep.mubr.bf16.mxu0 0
    %468 = vmatmul.mubr.bf16.gmra.mrb[0].mxu0 %v335
    %v469 = vpop.f32.mrb[0].mxu0
    %v470 = vadd.f32 0.0, %v469
    %v471 = vpop.f32.mrb[0].mxu0
    %v472 = vpop.f32.mrb[0].mxu0
    %v473 = vadd.f32 0.0, %v472
    %v474 = vpop.f32.mrb[0].mxu0
    %475 = vmatprep.mubr.bf16.mxu0 0
    %476 = vmatmul.mubr.bf16.gmra.mrb[0].mxu0 %v336
    %v477 = vpop.f32.mrb[0].mxu0
    %v478 = vadd.f32 0.0, %v477
    %v479 = vpop.f32.mrb[0].mxu0
    %v480 = vpop.f32.mrb[0].mxu0
    %v481 = vadd.f32 0.0, %v480
    %v482 = vpop.f32.mrb[0].mxu0
    %483 = vmatprep.mubr.bf16.mxu0 0
    %484 = vmatmul.mubr.bf16.gmra.mrb[0].mxu0 %v337
    %v485 = vpop.f32.mrb[0].mxu0
    %v486 = vadd.f32 0.0, %v485
    %v487 = vpop.f32.mrb[0].mxu0
    %v488 = vpop.f32.mrb[0].mxu0
    %v489 = vadd.f32 0.0, %v488
    %v490 = vpop.f32.mrb[0].mxu0
    %491 = vmatprep.mubr.bf16.mxu0 0
    %492 = vmatmul.mubr.bf16.gmra.mrb[0].mxu0 %v338
    %v493 = vpop.f32.mrb[0].mxu0
    %v494 = vadd.f32 0.0, %v493
    %v495 = vpop.f32.mrb[0].mxu0
    %v496 = vpop.f32.mrb[0].mxu0
    %v497 = vadd.f32 0.0, %v496
    %v498 = vpop.f32.mrb[0].mxu0
    %499 = vdwg.mxu0
    %v500 = vpack.c.bf16 %v441, %v438
    %v501 = vpack.c.bf16 %v449, %v446
    %v502 = vpack.c.bf16 %v457, %v454
    %v503 = vpack.c.bf16 %v465, %v462
    %v504 = vpack.c.bf16 %v473, %v470
    %v505 = vpack.c.bf16 %v481, %v478
    %v506 = vpack.c.bf16 %v489, %v486
    %v507 = vpack.c.bf16 %v497, %v494
    %v508 = vld [vmem:[%s4] sm:$0x1]
    %v510 = vlaneseq
    %v511 = vshrl.u32 %v510, 7
    %v512 = vsub.s32 0, %v511
    %v513 = vrot.slane %v508, %v512
    %515 = vmatprep.subr.bf16.mxu0 0
    %516 = vmatpush1.bf16.msra.mxu0 %v500
    %517 = vmatprep.subr.bf16.mxu0 0
    %518 = vmatpush1.bf16.msra.mxu0 %v501
    %519 = vmatprep.subr.bf16.mxu0 0
    %520 = vmatpush1.bf16.msra.mxu0 %v502
    %521 = vmatprep.subr.bf16.mxu0 0
    %522 = vmatpush1.bf16.msra.mxu0 %v503
    %523 = vmatprep.subr.bf16.mxu0 0
    %524 = vmatpush1.bf16.msra.mxu0 %v504
    %525 = vmatprep.subr.bf16.mxu0 0
    %526 = vmatpush1.bf16.msra.mxu0 %v505
    %527 = vmatprep.subr.bf16.mxu0 0
    %528 = vmatpush1.bf16.msra.mxu0 %v506
    %529 = vmatprep.subr.bf16.mxu0 0
    %530 = vmatpush1.bf16.msra.mxu0 %v507
    %531 = vmatprep.subr.bf16.mxu0 0
    %532 = vmatpush1.bf16.msra.mxu0 0
    %533 = vmatprep.subr.bf16.mxu0 0
    %534 = vmatpush1.bf16.msra.mxu0 0
    %535 = vmatprep.subr.bf16.mxu0 0
    %536 = vmatpush1.bf16.msra.mxu0 0
    %537 = vmatprep.subr.bf16.mxu0 0
    %538 = vmatpush1.bf16.msra.mxu0 0
    %539 = vmatprep.subr.bf16.mxu0 0
    %540 = vmatpush1.bf16.msra.mxu0 0
    %541 = vmatprep.subr.bf16.mxu0 0
    %542 = vmatpush1.bf16.msra.mxu0 0
    %543 = vmatprep.subr.bf16.mxu0 0
    %544 = vmatpush1.bf16.msra.mxu0 0
    %545 = vmatprep.subr.bf16.mxu0 0
    %546 = vmatpush1.bf16.msra.mxu0 0
    %547 = vmatprep.mubr.bf16.mxu0 0
    %548 = vmatmul.mubr.bf16.gmra.mrb[0].mxu0 %v154
    %v549 = vpop.f32.mrb[0].mxu0
    %v550 = vadd.f32 %v513, %v549
    %v551 = vpop.f32.mrb[0].mxu0
    %v552 = vpop.f32.mrb[0].mxu0
    %v553 = vadd.f32 %v513, %v552
    %v554 = vpop.f32.mrb[0].mxu0
    %555 = vmatprep.mubr.bf16.mxu0 0
    %556 = vmatmul.mubr.bf16.gmra.mrb[0].mxu0 %v155
    %v557 = vpop.f32.mrb[0].mxu0
    %v558 = vadd.f32 %v513, %v557
    %v559 = vpop.f32.mrb[0].mxu0
    %v560 = vpop.f32.mrb[0].mxu0
    %v561 = vadd.f32 %v513, %v560
    %v562 = vpop.f32.mrb[0].mxu0
    %563 = vmatprep.mubr.bf16.mxu0 0
    %564 = vmatmul.mubr.bf16.gmra.mrb[0].mxu0 %v156
    %v565 = vpop.f32.mrb[0].mxu0
    %v566 = vadd.f32 %v513, %v565
    %v567 = vpop.f32.mrb[0].mxu0
    %v568 = vpop.f32.mrb[0].mxu0
    %v569 = vadd.f32 %v513, %v568
    %v570 = vpop.f32.mrb[0].mxu0
    %571 = vmatprep.mubr.bf16.mxu0 0
    %572 = vmatmul.mubr.bf16.gmra.mrb[0].mxu0 %v157
    %v573 = vpop.f32.mrb[0].mxu0
    %v574 = vadd.f32 %v513, %v573
    %v575 = vpop.f32.mrb[0].mxu0
    %v576 = vpop.f32.mrb[0].mxu0
    %v577 = vadd.f32 %v513, %v576
    %v578 = vpop.f32.mrb[0].mxu0
    %579 = vmatprep.mubr.bf16.mxu0 0
    %580 = vmatmul.mubr.bf16.gmra.mrb[0].mxu0 %v158
    %v581 = vpop.f32.mrb[0].mxu0
    %v582 = vadd.f32 %v513, %v581
    %v583 = vpop.f32.mrb[0].mxu0
    %v584 = vpop.f32.mrb[0].mxu0
    %v585 = vadd.f32 %v513, %v584
    %v586 = vpop.f32.mrb[0].mxu0
    %587 = vmatprep.mubr.bf16.mxu0 0
    %588 = vmatmul.mubr.bf16.gmra.mrb[0].mxu0 %v159
    %v589 = vpop.f32.mrb[0].mxu0
    %v590 = vadd.f32 %v513, %v589
    %v591 = vpop.f32.mrb[0].mxu0
    %v592 = vpop.f32.mrb[0].mxu0
    %v593 = vadd.f32 %v513, %v592
    %v594 = vpop.f32.mrb[0].mxu0
    %595 = vmatprep.mubr.bf16.mxu0 0
    %596 = vmatmul.mubr.bf16.gmra.mrb[0].mxu0 %v160
    %v597 = vpop.f32.mrb[0].mxu0
    %v598 = vadd.f32 %v513, %v597
    %v599 = vpop.f32.mrb[0].mxu0
    %v600 = vpop.f32.mrb[0].mxu0
    %v601 = vadd.f32 %v513, %v600
    %v602 = vpop.f32.mrb[0].mxu0
    %603 = vmatprep.mubr.bf16.mxu0 0
    %604 = vmatmul.mubr.bf16.gmra.mrb[0].mxu0 %v161
    %v605 = vpop.f32.mrb[0].mxu0
    %v606 = vadd.f32 %v513, %v605
    %v607 = vpop.f32.mrb[0].mxu0
    %v608 = vpop.f32.mrb[0].mxu0
    %v609 = vadd.f32 %v513, %v608
    %v610 = vpop.f32.mrb[0].mxu0
    %611 = vdwg.mxu0
    %v612 = vmax.f32 %v550, 0.0
    %v613 = vmax.f32 %v553, 0.0
    %v614 = vmax.f32 %v558, 0.0
    %v615 = vmax.f32 %v561, 0.0
    %v616 = vmax.f32 %v566, 0.0
    %v617 = vmax.f32 %v569, 0.0
    %v618 = vmax.f32 %v574, 0.0
    %v619 = vmax.f32 %v577, 0.0
    %v620 = vmax.f32 %v582, 0.0
    %v621 = vmax.f32 %v585, 0.0
    %v622 = vmax.f32 %v590, 0.0
    %v623 = vmax.f32 %v593, 0.0
    %v624 = vmax.f32 %v598, 0.0
    %v625 = vmax.f32 %v601, 0.0
    %v626 = vmax.f32 %v606, 0.0
    %v627 = vmax.f32 %v609, 0.0
    %v628 = vpack.c.bf16 %v613, %v612
    %v629 = vpack.c.bf16 %v615, %v614
    %v630 = vpack.c.bf16 %v617, %v616
    %v631 = vpack.c.bf16 %v619, %v618
    %v632 = vpack.c.bf16 %v621, %v620
    %v633 = vpack.c.bf16 %v623, %v622
    %v634 = vpack.c.bf16 %v625, %v624
    %v635 = vpack.c.bf16 %v627, %v626
    %v636 = vld [vmem:[#allocation8] sm:$0xf]
    %v637 = vld [vmem:[#allocation8 + $0x4] sm:$0xf]
    %v638 = vld [vmem:[#allocation8 + $0x8] sm:$0xf]
    %v639 = vld [vmem:[#allocation8 + $0xc] sm:$0xf]
    %v640 = vld [vmem:[#allocation8 + $0x10] sm:$0xf]
    %v641 = vld [vmem:[#allocation8 + $0x14] sm:$0xf]
    %v642 = vld [vmem:[#allocation8 + $0x18] sm:$0xf]
    %v643 = vld [vmem:[#allocation8 + $0x1c] sm:$0xf]
    %v644 = vld [vmem:[#allocation8 + $0x20] sm:$0xf]
    %v645 = vld [vmem:[#allocation8 + $0x24] sm:$0xf]
    %v646 = vld [vmem:[#allocation8 + $0x28] sm:$0xf]
    %v647 = vld [vmem:[#allocation8 + $0x2c] sm:$0xf]
    %v648 = vld [vmem:[#allocation8 + $0x30] sm:$0xf]
    %v649 = vld [vmem:[#allocation8 + $0x34] sm:$0xf]
    %v650 = vld [vmem:[#allocation8 + $0x38] sm:$0xf]
    %v651 = vld [vmem:[#allocation8 + $0x3c] sm:$0xf]
    %v652 = vld [vmem:[%s6] sm:$0x1]
    %v654 = vlaneseq
    %v655 = vshrl.u32 %v654, 7
    %v656 = vsub.s32 0, %v655
    %v657 = vrot.slane %v652, %v656
    %v675 = vunpack.c.l.b16 %v636
    %v676 = vunpack.c.l.b16 %v637
    %v677 = vunpack.c.l.b16 %v638
    %v678 = vunpack.c.l.b16 %v639
    %v679 = vunpack.c.l.b16 %v640
    %v680 = vunpack.c.l.b16 %v641
    %v681 = vunpack.c.l.b16 %v642
    %v682 = vunpack.c.l.b16 %v643
    %v683 = vunpack.c.l.b16 %v644
    %v684 = vunpack.c.l.b16 %v645
    %v685 = vunpack.c.l.b16 %v646
    %v686 = vunpack.c.l.b16 %v647
    %v687 = vunpack.c.l.b16 %v648
    %v688 = vunpack.c.l.b16 %v649
    %v689 = vunpack.c.l.b16 %v650
    %v690 = vunpack.c.l.b16 %v651
    %v691 = vpack.c.b16 %v676, %v675
    %v692 = vpack.c.b16 %v678, %v677
    %v693 = vpack.c.b16 %v680, %v679
    %v694 = vpack.c.b16 %v682, %v681
    %v695 = vpack.c.b16 %v684, %v683
    %v696 = vpack.c.b16 %v686, %v685
    %v697 = vpack.c.b16 %v688, %v687
    %v698 = vpack.c.b16 %v690, %v689
    %707 = vmatprep.subr.bf16.mxu0 0
    %708 = vmatpush1.bf16.msra.mxu0 %v691
    %709 = vmatprep.subr.bf16.mxu0 0
    %710 = vmatpush1.bf16.msra.mxu0 %v692
    %711 = vmatprep.subr.bf16.mxu0 0
    %712 = vmatpush1.bf16.msra.mxu0 %v693
    %713 = vmatprep.subr.bf16.mxu0 0
    %714 = vmatpush1.bf16.msra.mxu0 %v694
    %715 = vmatprep.subr.bf16.mxu0 0
    %716 = vmatpush1.bf16.msra.mxu0 %v695
    %717 = vmatprep.subr.bf16.mxu0 0
    %718 = vmatpush1.bf16.msra.mxu0 %v696
    %719 = vmatprep.subr.bf16.mxu0 0
    %720 = vmatpush1.bf16.msra.mxu0 %v697
    %721 = vmatprep.subr.bf16.mxu0 0
    %722 = vmatpush1.bf16.msra.mxu0 %v698
    %723 = vmatprep.subr.bf16.mxu0 0
    %724 = vmatpush1.bf16.msra.mxu0 0
    %725 = vmatprep.subr.bf16.mxu0 0
    %726 = vmatpush1.bf16.msra.mxu0 0
    %727 = vmatprep.subr.bf16.mxu0 0
    %728 = vmatpush1.bf16.msra.mxu0 0
    %729 = vmatprep.subr.bf16.mxu0 0
    %730 = vmatpush1.bf16.msra.mxu0 0
    %731 = vmatprep.subr.bf16.mxu0 0
    %732 = vmatpush1.bf16.msra.mxu0 0
    %733 = vmatprep.subr.bf16.mxu0 0
    %734 = vmatpush1.bf16.msra.mxu0 0
    %735 = vmatprep.subr.bf16.mxu0 0
    %736 = vmatpush1.bf16.msra.mxu0 0
    %737 = vmatprep.subr.bf16.mxu0 0
    %738 = vmatpush1.bf16.msra.mxu0 0
    %739 = vmatprep.mubr.bf16.mxu0 0
    %740 = vmatmul.mubr.bf16.gmra.mrb[0].mxu0 %v628
    %v741 = vpop.f32.mrb[0].mxu0
    %v742 = vadd.f32 %v657, %v741
    %v743 = vpop.f32.mrb[0].mxu0
    %v744 = vpop.f32.mrb[0].mxu0
    %v745 = vadd.f32 %v657, %v744
    %v746 = vpop.f32.mrb[0].mxu0
    %747 = vmatprep.mubr.bf16.mxu0 0
    %748 = vmatmul.mubr.bf16.gmra.mrb[0].mxu0 %v629
    %v749 = vpop.f32.mrb[0].mxu0
    %v750 = vadd.f32 %v657, %v749
    %v751 = vpop.f32.mrb[0].mxu0
    %v752 = vpop.f32.mrb[0].mxu0
    %v753 = vadd.f32 %v657, %v752
    %v754 = vpop.f32.mrb[0].mxu0
    %755 = vmatprep.mubr.bf16.mxu0 0
    %756 = vmatmul.mubr.bf16.gmra.mrb[0].mxu0 %v630
    %v757 = vpop.f32.mrb[0].mxu0
    %v758 = vadd.f32 %v657, %v757
    %v759 = vpop.f32.mrb[0].mxu0
    %v760 = vpop.f32.mrb[0].mxu0
    %v761 = vadd.f32 %v657, %v760
    %v762 = vpop.f32.mrb[0].mxu0
    %763 = vmatprep.mubr.bf16.mxu0 0
    %764 = vmatmul.mubr.bf16.gmra.mrb[0].mxu0 %v631
    %v765 = vpop.f32.mrb[0].mxu0
    %v766 = vadd.f32 %v657, %v765
    %v767 = vpop.f32.mrb[0].mxu0
    %v768 = vpop.f32.mrb[0].mxu0
    %v769 = vadd.f32 %v657, %v768
    %v770 = vpop.f32.mrb[0].mxu0
    %771 = vmatprep.mubr.bf16.mxu0 0
    %772 = vmatmul.mubr.bf16.gmra.mrb[0].mxu0 %v632
    %v773 = vpop.f32.mrb[0].mxu0
    %v774 = vadd.f32 %v657, %v773
    %v775 = vpop.f32.mrb[0].mxu0
    %v776 = vpop.f32.mrb[0].mxu0
    %v777 = vadd.f32 %v657, %v776
    %v778 = vpop.f32.mrb[0].mxu0
    %779 = vmatprep.mubr.bf16.mxu0 0
    %780 = vmatmul.mubr.bf16.gmra.mrb[0].mxu0 %v633
    %v781 = vpop.f32.mrb[0].mxu0
    %v782 = vadd.f32 %v657, %v781
    %v783 = vpop.f32.mrb[0].mxu0
    %v784 = vpop.f32.mrb[0].mxu0
    %v785 = vadd.f32 %v657, %v784
    %v786 = vpop.f32.mrb[0].mxu0
    %787 = vmatprep.mubr.bf16.mxu0 0
    %788 = vmatmul.mubr.bf16.gmra.mrb[0].mxu0 %v634
    %v789 = vpop.f32.mrb[0].mxu0
    %v790 = vadd.f32 %v657, %v789
    %v791 = vpop.f32.mrb[0].mxu0
    %v792 = vpop.f32.mrb[0].mxu0
    %v793 = vadd.f32 %v657, %v792
    %v794 = vpop.f32.mrb[0].mxu0
    %795 = vmatprep.mubr.bf16.mxu0 0
    %796 = vmatmul.mubr.bf16.gmra.mrb[0].mxu0 %v635
    %v797 = vpop.f32.mrb[0].mxu0
    %v798 = vadd.f32 %v657, %v797
    %v799 = vpop.f32.mrb[0].mxu0
    %v800 = vpop.f32.mrb[0].mxu0
    %v801 = vadd.f32 %v657, %v800
    %v802 = vpop.f32.mrb[0].mxu0
    %803 = vdwg.mxu0
    %804 = vst [vmem:[#allocation10] sm:$0xff] %v742
    %805 = vst [vmem:[#allocation10 + $0x8] sm:$0xff] %v745
    %806 = vst [vmem:[#allocation10 + $0x10] sm:$0xff] %v750
    %807 = vst [vmem:[#allocation10 + $0x18] sm:$0xff] %v753
    %808 = vst [vmem:[#allocation10 + $0x20] sm:$0xff] %v758
    %809 = vst [vmem:[#allocation10 + $0x28] sm:$0xff] %v761
    %810 = vst [vmem:[#allocation10 + $0x30] sm:$0xff] %v766
    %811 = vst [vmem:[#allocation10 + $0x38] sm:$0xff] %v769
    %812 = vst [vmem:[#allocation10 + $0x40] sm:$0xff] %v774
    %813 = vst [vmem:[#allocation10 + $0x48] sm:$0xff] %v777
    %814 = vst [vmem:[#allocation10 + $0x50] sm:$0xff] %v782
    %815 = vst [vmem:[#allocation10 + $0x58] sm:$0xff] %v785
    %816 = vst [vmem:[#allocation10 + $0x60] sm:$0xff] %v790
    %817 = vst [vmem:[#allocation10 + $0x68] sm:$0xff] %v793
    %818 = vst [vmem:[#allocation10 + $0x70] sm:$0xff] %v798
    %819 = vst [vmem:[#allocation10 + $0x78] sm:$0xff] %v801
    // Predicated region
    $region46: #{tpu_custom_call.1} parent=1 // pred_check
      _
    $region47: #{tpu_custom_call.1} parent=1 // pred_check_branch
      %821 = sbr.rel (0) target = $region49
    $region48: #{tpu_custom_call.1} parent=1 // pred_region
      %s823 = ssub.s32 2048, 2048
      %824 = vsyncadd [#allocation4], %s823
      %s825 = sshll.u32 [#allocation10], 4
      %s826 = int_to_ptr.vmem [resolvable:$true] %s825
      %831 = dma.vmem_to_hbm [thread:$0]  %s826, 2048, %s7, [#allocation4], 128, 128, 8
    $region49: #{tpu_custom_call.1} parent=1 // pred_fallthru
      _
    // Predicated region
    $region50: #{tpu_custom_call.1} parent=1 // pred_check
      _
    $region51: #{tpu_custom_call.1} parent=1 // pred_check_branch
      %833 = sbr.rel (0) target = $region53
    $region52: #{tpu_custom_call.1} parent=1 // pred_region
      %834 = dma.done [#allocation4], 2048
    $region53: #{tpu_custom_call.1} parent=1 // pred_fallthru
      _
    %835 = vsyncpa [#allocation3], 1
    %836 = vsyncpa [#allocation6], 1
    %837 = vsyncpa [#allocation9], 1
    %838 = vsyncpa [#allocation4], 1

</llo_original>
